<compile_context>
chip_gen: v7x
topology: tpu7x:2x2x1
jax: 0.10.0
libtpu: 0.0.40
codegen_flags: <defaults>
</compile_context>

<pallas_src>
import functools

import jax
import jax.numpy as jnp
from jax.experimental import pallas as pl
from jax.experimental.pallas import tpu as pltpu


def _round_up(x: int, m: int) -> int:
    return (x + m - 1) // m * m


def _ppo_fused_kernel(x_ref, w1_ref, b1_ref, w2_ref, b2_ref, w3_ref, b3_ref,
                      probs_ref, value_ref, *, act_dim: int):
    """One batch tile: 3 fused matmuls + masked softmax.

    Outputs: lane-dense bf16 probability slab (padded lanes are exactly 0) and
    a separate f32 critic value column.
    """
    x = x_ref[...]
    if x.dtype != w1_ref.dtype:           # cast point if packed weights are bf16
        x = x.astype(w1_ref.dtype)

    # Layer 1: x @ [aw1 | cw1]  (actor and critic hidden states side by side).
    h = jnp.dot(x, w1_ref[...], preferred_element_type=jnp.float32) + b1_ref[...]
    h = jnp.maximum(h, 0.0)

    # Layer 2: block-diagonal fused second linear layer.
    h2 = h if h.dtype == w2_ref.dtype else h.astype(w2_ref.dtype)
    h = jnp.dot(h2, w2_ref[...], preferred_element_type=jnp.float32) + b2_ref[...]
    h = jnp.maximum(h, 0.0)

    # Layer 3: fused head. Columns [0, act_dim) are actor logits, column
    # act_dim is the critic value, remaining lanes are zero padding (the
    # zero-padded w3/b3 packing keeps the masked softmax NaN-free).
    h3 = h if h.dtype == w3_ref.dtype else h.astype(w3_ref.dtype)
    z = jnp.dot(h3, w3_ref[...], preferred_element_type=jnp.float32) + b3_ref[...]

    # Critic value (static lane slice), stored in f32.
    value_ref[...] = z[:, act_dim:act_dim + 1].astype(value_ref.dtype)

    # Numerically-stable softmax over the actor lanes only (padding -> -inf,
    # exp(-inf) = 0, so padded lanes come out exactly 0).  Exact division.
    col = jax.lax.broadcasted_iota(jnp.int32, z.shape, dimension=1)
    logits = jnp.where(col < act_dim, z, -jnp.inf)
    m = jnp.max(logits, axis=-1, keepdims=True)
    e = jnp.exp(logits - m)
    probs = e / jnp.sum(e, axis=-1, keepdims=True)

    probs_ref[...] = probs.astype(probs_ref.dtype)


def pack_params(params, output_dim: int, *, param_dtype=jnp.float32,
                lane_multiple: int = 128):
    """Fuses per-layer actor/critic weights into 3 padded, lane-dense matrices.

    param_dtype: jnp.bfloat16 is recommended on v6e/v7x at realistic widths
        (native-bf16 MXU, halves weight VMEM/DMA); biases stay f32 since the
        bias-add / ReLU / softmax run in f32 after the MXU accumulation.
    lane_multiple: 128 is always layout-correct; use 256 on v6e/v7x once the
        model is large enough to be MXU-bound (256x256 systolic array).
    """
    H = params["aw2"].shape[0]
    in_dim = params["aw1"].shape[0]
    H2 = 2 * H
    H2p = _round_up(H2, lane_multiple)           # fused hidden width, lane aligned
    out_pad = _round_up(output_dim + 1, lane_multiple)  # logits + value, lane aligned
    f32 = jnp.float32

    # NOTE(scale-up): for H >= 128 split w2/w3 per tower instead of this
    # block-diagonal packing to avoid 2x wasted MXU MACs (most relevant on v5e).
    w1 = jnp.zeros((in_dim, H2p), param_dtype)
    w1 = w1.at[:, :H].set(params["aw1"].astype(param_dtype))
    w1 = w1.at[:, H:H2].set(params["cw1"].astype(param_dtype))
    b1 = jnp.zeros((1, H2p), f32)
    b1 = b1.at[:, :H].set(params["ab1"]).at[:, H:H2].set(params["cb1"])

    w2 = jnp.zeros((H2p, H2p), param_dtype)
    w2 = w2.at[:H, :H].set(params["aw2"].astype(param_dtype))
    w2 = w2.at[H:H2, H:H2].set(params["cw2"].astype(param_dtype))
    b2 = jnp.zeros((1, H2p), f32)
    b2 = b2.at[:, :H].set(params["ab2"]).at[:, H:H2].set(params["cb2"])

    w3 = jnp.zeros((H2p, out_pad), param_dtype)
    w3 = w3.at[:H, :output_dim].set(params["aw3"].astype(param_dtype))
    w3 = w3.at[H:H2, output_dim:output_dim + 1].set(params["cw3"].astype(param_dtype))
    b3 = jnp.zeros((1, out_pad), f32)
    b3 = b3.at[:, :output_dim].set(params["ab3"])
    b3 = b3.at[:, output_dim:output_dim + 1].set(params["cb3"])

    return dict(w1=w1, b1=b1, w2=w2, b2=b2, w3=w3, b3=b3,
                output_dim=output_dim, out_pad=out_pad)


def ppo_forward(state, packed, *, tile_b=None):
    """PPONetwork forward: returns (action_probs [B, out] f32, value [B, 1] f32)."""
    B, in_dim = state.shape
    output_dim = packed["output_dim"]
    out_pad = packed["out_pad"]

    if tile_b is None:
        # <=512-row tiles (HBM-roofline sweet spot), and >=2 grid steps once
        # B >= 16 so both v7x TensorCores get work.  Always a multiple of 8.
        tile_b = min(512, _round_up(max((B + 1) // 2, 1), 8))
    grid = (pl.cdiv(B, tile_b),)   # ragged last tile handled by Pallas; no jnp.pad copy

    kernel = functools.partial(_ppo_fused_kernel, act_dim=output_dim)

    def resident(arr):
        # Full-array block whose index never changes -> DMA'd once, reused.
        return pl.BlockSpec(arr.shape, lambda i: (0, 0))

    # Scoped-VMEM sizing from the real buffers (default 2-deep buffering).
    weight_bytes = sum(int(packed[k].size) * packed[k].dtype.itemsize
                       for k in ("w1", "b1", "w2", "b2", "w3", "b3"))
    stream_bytes = 2 * tile_b * (in_dim * state.dtype.itemsize + out_pad * 2 + 4)
    vmem_need = 2 * weight_bytes + stream_bytes
    compiler_kwargs = dict(dimension_semantics=("parallel",))
    if vmem_need > (32 << 20):   # only override the default scoped limit if required
        compiler_kwargs["vmem_limit_bytes"] = min(int(vmem_need * 1.25), 48 << 20)

    probs_slab, value = pl.pallas_call(
        kernel,
        out_shape=(jax.ShapeDtypeStruct((B, out_pad), jnp.bfloat16),
                   jax.ShapeDtypeStruct((B, 1), jnp.float32)),
        grid=grid,
        in_specs=[
            pl.BlockSpec((tile_b, in_dim), lambda i: (i, 0)),   # state tile
            resident(packed["w1"]), resident(packed["b1"]),
            resident(packed["w2"]), resident(packed["b2"]),
            resident(packed["w3"]), resident(packed["b3"]),
        ],
        out_specs=(pl.BlockSpec((tile_b, out_pad), lambda i: (i, 0)),
                   pl.BlockSpec((tile_b, 1), lambda i: (i, 0))),
        compiler_params=pltpu.CompilerParams(**compiler_kwargs),
    )(state, packed["w1"], packed["b1"], packed["w2"], packed["b2"],
      packed["w3"], packed["b3"])

    probs = probs_slab[:, :output_dim].astype(jnp.float32)
    return probs, value


def init_params(key, input_dim, hidden_dim, output_dim):
    """Deterministic PyTorch-Linear-style init (uniform +-1/sqrt(fan_in))."""
    def linear(k, fan_in, fan_out):
        kw, kb = jax.random.split(k)
        bound = 1.0 / jnp.sqrt(fan_in)
        w = jax.random.uniform(kw, (fan_in, fan_out), jnp.float32, -bound, bound)
        b = jax.random.uniform(kb, (1, fan_out), jnp.float32, -bound, bound)
        return w, b

    keys = jax.random.split(key, 6)
    aw1, ab1 = linear(keys[0], input_dim, hidden_dim)
    aw2, ab2 = linear(keys[1], hidden_dim, hidden_dim)
    aw3, ab3 = linear(keys[2], hidden_dim, output_dim)
    cw1, cb1 = linear(keys[3], input_dim, hidden_dim)
    cw2, cb2 = linear(keys[4], hidden_dim, hidden_dim)
    cw3, cb3 = linear(keys[5], hidden_dim, 1)
    return dict(aw1=aw1, ab1=ab1, aw2=aw2, ab2=ab2, aw3=aw3, ab3=ab3,
                cw1=cw1, cb1=cb1, cw2=cw2, cb2=cb2, cw3=cw3, cb3=cb3)


def _reference_forward(state, p):
    """Pure-JAX reference (unfused) for correctness checking."""
    h = jnp.maximum(state @ p["aw1"] + p["ab1"], 0.0)
    h = jnp.maximum(h @ p["aw2"] + p["ab2"], 0.0)
    logits = h @ p["aw3"] + p["ab3"]
    probs = jax.nn.softmax(logits, axis=-1)
    g = jnp.maximum(state @ p["cw1"] + p["cb1"], 0.0)
    g = jnp.maximum(g @ p["cw2"] + p["cb2"], 0.0)
    value = g @ p["cw3"] + p["cb3"]
    return probs, value


if __name__ == "__main__":
    key = jax.random.PRNGKey(0)
    k_state, k_params = jax.random.split(key)

    batch, input_dim, hidden_dim, output_dim = 8, 16, 32, 8
    state = jax.random.normal(k_state, (batch, input_dim), jnp.float32)
    params = init_params(k_params, input_dim, hidden_dim, output_dim)
    packed = pack_params(params, output_dim)   # param_dtype=jnp.bfloat16 on v6e/v7x at scale

    probs, value = jax.block_until_ready(ppo_forward(state, packed))

    ref_probs, ref_value = _reference_forward(state, params)
    assert probs.shape == (batch, output_dim)
    assert value.shape == (batch, 1)
    # Softmax uses an exact divide; remaining prob error is bf16 storage rounding.
    assert jnp.allclose(probs, ref_probs, atol=4e-3, rtol=4e-3)
    assert jnp.allclose(value, ref_value, atol=1e-4, rtol=1e-4)
    assert jnp.allclose(jnp.sum(probs, axis=-1), 1.0, atol=1e-2)

    print("KERNEL_OK")
</pallas_src>

<mosaic_0001>
module attributes {stable_mosaic.version = 11 : i64} {
  func.func @_ppo_fused_kernel(%arg0: i32, %arg1: memref<8x16xf32, #tpu.memory_space<vmem>>, %arg2: memref<16x128xf32, #tpu.memory_space<vmem>>, %arg3: memref<1x128xf32, #tpu.memory_space<vmem>>, %arg4: memref<128x128xf32, #tpu.memory_space<vmem>>, %arg5: memref<1x128xf32, #tpu.memory_space<vmem>>, %arg6: memref<128x128xf32, #tpu.memory_space<vmem>>, %arg7: memref<1x128xf32, #tpu.memory_space<vmem>>, %arg8: memref<8x128xbf16, #tpu.memory_space<vmem>>, %arg9: memref<8x1xf32, #tpu.memory_space<vmem>>) attributes {dimension_semantics = [#tpu.dimension_semantics<parallel>], iteration_bounds = array<i64: 1>, scalar_prefetch = 0 : i64, scratch_operands = 0 : i64, tpu.core_type = #tpu.core_type<tc>, window_params = [{transform_indices = @transform_0, window_bounds = array<i64: 8, 16>}, {pipeline_mode = #tpu.pipeline_mode<synchronous>, transform_indices = @transform_1, window_bounds = array<i64: 16, 128>}, {pipeline_mode = #tpu.pipeline_mode<synchronous>, transform_indices = @transform_2, window_bounds = array<i64: 1, 128>}, {pipeline_mode = #tpu.pipeline_mode<synchronous>, transform_indices = @transform_3, window_bounds = array<i64: 128, 128>}, {pipeline_mode = #tpu.pipeline_mode<synchronous>, transform_indices = @transform_4, window_bounds = array<i64: 1, 128>}, {pipeline_mode = #tpu.pipeline_mode<synchronous>, transform_indices = @transform_5, window_bounds = array<i64: 128, 128>}, {pipeline_mode = #tpu.pipeline_mode<synchronous>, transform_indices = @transform_6, window_bounds = array<i64: 1, 128>}, {transform_indices = @transform_7, window_bounds = array<i64: 8, 128>}, {transform_indices = @transform_8, window_bounds = array<i64: 8, 1>}]} {
    %c0 = arith.constant 0 : index
    %c0_0 = arith.constant 0 : index
    %0 = vector.load %arg1[%c0, %c0_0] : memref<8x16xf32, #tpu.memory_space<vmem>>, vector<8x16xf32>
    %c0_1 = arith.constant 0 : index
    %c0_2 = arith.constant 0 : index
    %1 = vector.load %arg2[%c0_1, %c0_2] : memref<16x128xf32, #tpu.memory_space<vmem>>, vector<16x128xf32>
    %cst = arith.constant dense<0.000000e+00> : vector<8x128xf32>
    %2 = tpu.matmul %0, %1, %cst {dimension_numbers = #tpu.dot_dimension_numbers<[1], [0], [0], [1], [0, 0, 1, 1], [], []>} : vector<8x16xf32>, vector<16x128xf32>, vector<8x128xf32> -> vector<8x128xf32>
    %c0_3 = arith.constant 0 : index
    %c0_4 = arith.constant 0 : index
    %3 = vector.load %arg3[%c0_3, %c0_4] : memref<1x128xf32, #tpu.memory_space<vmem>>, vector<1x128xf32>
    %4 = vector.broadcast %3 : vector<1x128xf32> to vector<8x128xf32>
    %5 = arith.addf %2, %4 : vector<8x128xf32>
    %cst_5 = arith.constant 0.000000e+00 : f32
    %6 = vector.broadcast %cst_5 : f32 to vector<8x128xf32>
    %7 = arith.maximumf %5, %6 : vector<8x128xf32>
    %c0_6 = arith.constant 0 : index
    %c0_7 = arith.constant 0 : index
    %8 = vector.load %arg4[%c0_6, %c0_7] : memref<128x128xf32, #tpu.memory_space<vmem>>, vector<128x128xf32>
    %cst_8 = arith.constant dense<0.000000e+00> : vector<8x128xf32>
    %9 = tpu.matmul %7, %8, %cst_8 {dimension_numbers = #tpu.dot_dimension_numbers<[1], [0], [0], [1], [0, 0, 1, 1], [], []>} : vector<8x128xf32>, vector<128x128xf32>, vector<8x128xf32> -> vector<8x128xf32>
    %c0_9 = arith.constant 0 : index
    %c0_10 = arith.constant 0 : index
    %10 = vector.load %arg5[%c0_9, %c0_10] : memref<1x128xf32, #tpu.memory_space<vmem>>, vector<1x128xf32>
    %11 = vector.broadcast %10 : vector<1x128xf32> to vector<8x128xf32>
    %12 = arith.addf %9, %11 : vector<8x128xf32>
    %cst_11 = arith.constant 0.000000e+00 : f32
    %13 = vector.broadcast %cst_11 : f32 to vector<8x128xf32>
    %14 = arith.maximumf %12, %13 : vector<8x128xf32>
    %c0_12 = arith.constant 0 : index
    %c0_13 = arith.constant 0 : index
    %15 = vector.load %arg6[%c0_12, %c0_13] : memref<128x128xf32, #tpu.memory_space<vmem>>, vector<128x128xf32>
    %cst_14 = arith.constant dense<0.000000e+00> : vector<8x128xf32>
    %16 = tpu.matmul %14, %15, %cst_14 {dimension_numbers = #tpu.dot_dimension_numbers<[1], [0], [0], [1], [0, 0, 1, 1], [], []>} : vector<8x128xf32>, vector<128x128xf32>, vector<8x128xf32> -> vector<8x128xf32>
    %c0_15 = arith.constant 0 : index
    %c0_16 = arith.constant 0 : index
    %17 = vector.load %arg7[%c0_15, %c0_16] : memref<1x128xf32, #tpu.memory_space<vmem>>, vector<1x128xf32>
    %18 = vector.broadcast %17 : vector<1x128xf32> to vector<8x128xf32>
    %19 = arith.addf %16, %18 : vector<8x128xf32>
    %20 = vector.extract_strided_slice %19 {offsets = [0, 8], sizes = [8, 1], strides = [1, 1]} : vector<8x128xf32> to vector<8x1xf32>
    %c0_17 = arith.constant 0 : index
    %c0_18 = arith.constant 0 : index
    %21 = vector.load %arg9[%c0_17, %c0_18] : memref<8x1xf32, #tpu.memory_space<vmem>>, vector<8x1xf32>
    tpu.vector_store %arg9[%c0_17, %c0_18], %20 {strides = array<i32>} : memref<8x1xf32, #tpu.memory_space<vmem>>, vector<8x1xf32>,
    %22 = tpu.iota {dimensions = array<i32: 1>} : vector<8x128xi32>
    %c8_i32 = arith.constant 8 : i32
    %23 = vector.broadcast %c8_i32 : i32 to vector<8x128xi32>
    %24 = arith.cmpi slt, %22, %23 : vector<8x128xi32>
    %cst_19 = arith.constant 0xFF800000 : f32
    %25 = vector.broadcast %cst_19 : f32 to vector<8x128xf32>
    %26 = arith.select %24, %19, %25 : vector<8x128xi1>, vector<8x128xf32>
    %cst_20 = arith.constant dense<0xFF800000> : vector<8xf32>
    %27 = vector.multi_reduction <maximumf>, %26, %cst_20 [1] : vector<8x128xf32> to vector<8xf32>
    %28 = vector.shape_cast %27 : vector<8xf32> to vector<8x1xf32>
    %29 = vector.broadcast %28 : vector<8x1xf32> to vector<8x128xf32>
    %30 = arith.subf %26, %29 : vector<8x128xf32>
    %31 = math.exp %30 : vector<8x128xf32>
    %cst_21 = arith.constant dense<0.000000e+00> : vector<8xf32>
    %32 = vector.multi_reduction <add>, %31, %cst_21 [1] : vector<8x128xf32> to vector<8xf32>
    %33 = vector.shape_cast %32 : vector<8xf32> to vector<8x1xf32>
    %34 = vector.broadcast %33 : vector<8x1xf32> to vector<8x128xf32>
    %35 = arith.divf %31, %34 : vector<8x128xf32>
    %36 = arith.truncf %35 : vector<8x128xf32> to vector<8x128xbf16>
    %c0_22 = arith.constant 0 : index
    %c0_23 = arith.constant 0 : index
    %37 = vector.load %arg8[%c0_22, %c0_23] : memref<8x128xbf16, #tpu.memory_space<vmem>>, vector<8x128xbf16>
    tpu.vector_store %arg8[%c0_22, %c0_23], %36 {strides = array<i32>} : memref<8x128xbf16, #tpu.memory_space<vmem>>, vector<8x128xbf16>,
    return
  }
  func.func @transform_0(%arg0: i32) -> (i32, i32) {
    %c0_i32 = arith.constant 0 : i32
    %c0_i32_0 = arith.constant 0 : i32
    return %arg0, %c0_i32 : i32, i32
  }
  func.func @transform_1(%arg0: i32) -> (i32, i32) {
    %c0_i32 = arith.constant 0 : i32
    %c0_i32_0 = arith.constant 0 : i32
    %c0_i32_1 = arith.constant 0 : i32
    return %c0_i32, %c0_i32_0 : i32, i32
  }
  func.func @transform_2(%arg0: i32) -> (i32, i32) {
    %c0_i32 = arith.constant 0 : i32
    %c0_i32_0 = arith.constant 0 : i32
    %c0_i32_1 = arith.constant 0 : i32
    return %c0_i32, %c0_i32_0 : i32, i32
  }
  func.func @transform_3(%arg0: i32) -> (i32, i32) {
    %c0_i32 = arith.constant 0 : i32
    %c0_i32_0 = arith.constant 0 : i32
    %c0_i32_1 = arith.constant 0 : i32
    return %c0_i32, %c0_i32_0 : i32, i32
  }
  func.func @transform_4(%arg0: i32) -> (i32, i32) {
    %c0_i32 = arith.constant 0 : i32
    %c0_i32_0 = arith.constant 0 : i32
    %c0_i32_1 = arith.constant 0 : i32
    return %c0_i32, %c0_i32_0 : i32, i32
  }
  func.func @transform_5(%arg0: i32) -> (i32, i32) {
    %c0_i32 = arith.constant 0 : i32
    %c0_i32_0 = arith.constant 0 : i32
    %c0_i32_1 = arith.constant 0 : i32
    return %c0_i32, %c0_i32_0 : i32, i32
  }
  func.func @transform_6(%arg0: i32) -> (i32, i32) {
    %c0_i32 = arith.constant 0 : i32
    %c0_i32_0 = arith.constant 0 : i32
    %c0_i32_1 = arith.constant 0 : i32
    return %c0_i32, %c0_i32_0 : i32, i32
  }
  func.func @transform_7(%arg0: i32) -> (i32, i32) {
    %c0_i32 = arith.constant 0 : i32
    %c0_i32_0 = arith.constant 0 : i32
    return %arg0, %c0_i32 : i32, i32
  }
  func.func @transform_8(%arg0: i32) -> (i32, i32) {
    %c0_i32 = arith.constant 0 : i32
    %c0_i32_0 = arith.constant 0 : i32
    return %arg0, %c0_i32 : i32, i32
  }
}

</mosaic_0001>

<llo_original>
// kernel: tpu_custom_call.1
$region0: #{tpu_custom_call.1}
  #allocation0 [shape = 'u32[]', space=smem, size = 0x4, offset = 0x4, fixed_abs, tag = 'smem constant byte address 0x4 - core index']
  #allocation1 [shape = 'u32[144,128]{1,0:T(1,128)}', space=vmem, size = 0x12000, scoped, tag = 'internal scratch']
  %s0 = inlined_call_operand.hbm [shape: f32[8,16], index: 0, kind: input, shape index: {}]
  %s1 = inlined_call_operand.hbm [shape: f32[16,128], index: 1, kind: input, shape index: {}]
  %s2 = inlined_call_operand.vmem [shape: f32[1,128], index: 2, kind: input, shape index: {}]
  %s3 = inlined_call_operand.hbm [shape: f32[128,128], index: 3, kind: input, shape index: {}]
  %s4 = inlined_call_operand.vmem [shape: f32[1,128], index: 4, kind: input, shape index: {}]
  %s5 = inlined_call_operand.hbm [shape: f32[128,128], index: 5, kind: input, shape index: {}]
  %s6 = inlined_call_operand.vmem [shape: f32[1,128], index: 6, kind: input, shape index: {}]
  %s7 = inlined_call_operand.hbm [shape: bf16[8,128], index: 7, kind: output, shape index: {0}]
  %s8 = inlined_call_operand.vmem [shape: f32[8,1], index: 8, kind: output, shape index: {1}]
  %9 = xla_tuple %s7, %s8
  %s10 = sld [smem:[#allocation0]]
  $region62: #{tpu_custom_call.1} parent=0
    _
  %s12 = ssub.s32 1, %s10
  %s13 = scalar_select 0, %s12, %s10
  $region1: #{tpu_custom_call.1} parent=0
    #allocation2 [shape = 'u8[4096]{0}', space=vmem, size = 0x1000, scoped, tag = 'input window, operand 0, single buffered']
    #allocation3 [shape = 's32[1]{0}', space=sflag, size = 0x4, scoped, tag = 'scoped memory for tpu_custom_call.1']
    #allocation4 [shape = 's32[1]{0}', space=sflag, size = 0x4, scoped, tag = 'scoped memory for tpu_custom_call.1']
    #allocation5 [shape = 'u8[8192]{0}', space=vmem, size = 0x2000, scoped, tag = 'input window, operand 1, single buffered']
    #allocation6 [shape = 's32[1]{0}', space=sflag, size = 0x4, scoped, tag = 'scoped memory for tpu_custom_call.1']
    #allocation7 [shape = 'u8[65536]{0}', space=vmem, size = 0x10000, scoped, tag = 'input window, operand 3, single buffered']
    #allocation8 [shape = 'u8[65536]{0}', space=vmem, size = 0x10000, scoped, tag = 'input window, operand 5, single buffered']
    #allocation9 [shape = 's32[1]{0}', space=sflag, size = 0x4, scoped, tag = 'scoped memory for tpu_custom_call.1']
    #allocation10 [shape = 'u8[2048]{0}', space=vmem, size = 0x800, scoped, tag = 'output window, operand 0, single buffered']
    %14 = vsyncpa [#allocation3], 0
    %15 = vsyncpa [#allocation6], 0
    %16 = vsyncpa [#allocation9], 0
    %17 = vsyncpa [#allocation4], 0
    // Predicated region
    $region2: #{tpu_custom_call.1} parent=1 // pred_check
      _
    $region3: #{tpu_custom_call.1} parent=1 // pred_check_branch
      %19 = sbr.rel (0) target = $region5
    $region4: #{tpu_custom_call.1} parent=1 // pred_region
      %s21 = ssub.s32 128, 128
      %22 = vsyncadd [#allocation3], %s21
      %s24 = sshll.u32 [#allocation2], 4
      %s25 = int_to_ptr.vmem [resolvable:$true] %s24
      %27 = dma.hbm_to_vmem [thread:$0]  %s0, 128, %s25, [#allocation3]
    $region5: #{tpu_custom_call.1} parent=1 // pred_fallthru
      _
    // Predicated region
    $region6: #{tpu_custom_call.1} parent=1 // pred_check
      _
    $region7: #{tpu_custom_call.1} parent=1 // pred_check_branch
      %29 = sbr.rel (0) target = $region9
    $region8: #{tpu_custom_call.1} parent=1 // pred_region
      %s31 = ssub.s32 256, 256
      %32 = vsyncadd [#allocation6], %s31
      %s33 = sshll.u32 [#allocation5], 4
      %s34 = int_to_ptr.vmem [resolvable:$true] %s33
      %39 = dma.hbm_to_vmem [thread:$0]  %s1, 256, %s34, [#allocation6], 128, 128, 8
    $region9: #{tpu_custom_call.1} parent=1 // pred_fallthru
      _
    // Predicated region
    $region10: #{tpu_custom_call.1} parent=1 // pred_check
      _
    $region11: #{tpu_custom_call.1} parent=1 // pred_check_branch
      %41 = sbr.rel (0) target = $region13
    $region12: #{tpu_custom_call.1} parent=1 // pred_region
      _
    $region13: #{tpu_custom_call.1} parent=1 // pred_fallthru
      _
    // Predicated region
    $region14: #{tpu_custom_call.1} parent=1 // pred_check
      _
    $region15: #{tpu_custom_call.1} parent=1 // pred_check_branch
      %43 = sbr.rel (0) target = $region17
    $region16: #{tpu_custom_call.1} parent=1 // pred_region
      %s45 = ssub.s32 2048, 2048
      %46 = vsyncadd [#allocation6], %s45
      %s47 = sshll.u32 [#allocation7], 4
      %s48 = int_to_ptr.vmem [resolvable:$true] %s47
      %53 = dma.hbm_to_vmem [thread:$0]  %s3, 2048, %s48, [#allocation6], 128, 128, 8
    $region17: #{tpu_custom_call.1} parent=1 // pred_fallthru
      _
    // Predicated region
    $region18: #{tpu_custom_call.1} parent=1 // pred_check
      _
    $region19: #{tpu_custom_call.1} parent=1 // pred_check_branch
      %55 = sbr.rel (0) target = $region21
    $region20: #{tpu_custom_call.1} parent=1 // pred_region
      _
    $region21: #{tpu_custom_call.1} parent=1 // pred_fallthru
      _
    // Predicated region
    $region22: #{tpu_custom_call.1} parent=1 // pred_check
      _
    $region23: #{tpu_custom_call.1} parent=1 // pred_check_branch
      %57 = sbr.rel (0) target = $region25
    $region24: #{tpu_custom_call.1} parent=1 // pred_region
      %s59 = ssub.s32 2048, 2048
      %60 = vsyncadd [#allocation9], %s59
      %s61 = sshll.u32 [#allocation8], 4
      %s62 = int_to_ptr.vmem [resolvable:$true] %s61
      %67 = dma.hbm_to_vmem [thread:$0]  %s5, 2048, %s62, [#allocation9], 128, 128, 8
    $region25: #{tpu_custom_call.1} parent=1 // pred_fallthru
      _
    // Predicated region
    $region26: #{tpu_custom_call.1} parent=1 // pred_check
      _
    $region27: #{tpu_custom_call.1} parent=1 // pred_check_branch
      %69 = sbr.rel (0) target = $region29
    $region28: #{tpu_custom_call.1} parent=1 // pred_region
      _
    $region29: #{tpu_custom_call.1} parent=1 // pred_fallthru
      _
    // Predicated region
    $region30: #{tpu_custom_call.1} parent=1 // pred_check
      _
    $region31: #{tpu_custom_call.1} parent=1 // pred_check_branch
      %71 = sbr.rel (0) target = $region33
    $region32: #{tpu_custom_call.1} parent=1 // pred_region
      %72 = dma.done [#allocation3], 128
    $region33: #{tpu_custom_call.1} parent=1 // pred_fallthru
      _
    // Predicated region
    $region34: #{tpu_custom_call.1} parent=1 // pred_check
      _
    $region35: #{tpu_custom_call.1} parent=1 // pred_check_branch
      %74 = sbr.rel (0) target = $region37
    $region36: #{tpu_custom_call.1} parent=1 // pred_region
      %75 = dma.done [#allocation6], 256
    $region37: #{tpu_custom_call.1} parent=1 // pred_fallthru
      _
    // Predicated region
    $region38: #{tpu_custom_call.1} parent=1 // pred_check
      _
    $region39: #{tpu_custom_call.1} parent=1 // pred_check_branch
      %77 = sbr.rel (0) target = $region41
    $region40: #{tpu_custom_call.1} parent=1 // pred_region
      %78 = dma.done [#allocation6], 2048
    $region41: #{tpu_custom_call.1} parent=1 // pred_fallthru
      _
    // Predicated region
    $region42: #{tpu_custom_call.1} parent=1 // pred_check
      _
    $region43: #{tpu_custom_call.1} parent=1 // pred_check_branch
      %80 = sbr.rel (0) target = $region45
    $region44: #{tpu_custom_call.1} parent=1 // pred_region
      %81 = dma.done [#allocation9], 2048
    $region45: #{tpu_custom_call.1} parent=1 // pred_fallthru
      _
    %v82 = vld [vmem:[#allocation2] sm:$0xff]
    %v83 = vld [vmem:[#allocation5] sm:$0xff]
    %v84 = vld [vmem:[#allocation5 + $0x8] sm:$0xff]
    %v85 = vld [vmem:[%s2] sm:$0x1]
    %v87 = vlaneseq
    %v88 = vshrl.u32 %v87, 7
    %v89 = vsub.s32 0, %v88
    %v90 = vrot.slane %v85, %v89
    %vm92 = vcmask 130048
    %v94 = vsel %vm92, %v82, 0
    %96 = vmatprep.subr.mxu0 0.0
    %97 = vmatpush1.msra.mxu0 %v83
    %98 = vmatprep.subr.mxu0 0.0
    %99 = vmatpush1.msra.mxu0 %v84
    %100 = vmatprep.subr.mxu0 0.0
    %101 = vmatpush1.msra.mxu0 0.0
    %102 = vmatprep.subr.mxu0 0.0
    %103 = vmatpush1.msra.mxu0 0.0
    %104 = vmatprep.subr.mxu0 0.0
    %105 = vmatpush1.msra.mxu0 0.0
    %106 = vmatprep.subr.mxu0 0.0
    %107 = vmatpush1.msra.mxu0 0.0
    %108 = vmatprep.subr.mxu0 0.0
    %109 = vmatpush1.msra.mxu0 0.0
    %110 = vmatprep.subr.mxu0 0.0
    %111 = vmatpush1.msra.mxu0 0.0
    %112 = vmatprep.subr.mxu0 0.0
    %113 = vmatpush1.msra.mxu0 0.0
    %114 = vmatprep.subr.mxu0 0.0
    %115 = vmatpush1.msra.mxu0 0.0
    %116 = vmatprep.subr.mxu0 0.0
    %117 = vmatpush1.msra.mxu0 0.0
    %118 = vmatprep.subr.mxu0 0.0
    %119 = vmatpush1.msra.mxu0 0.0
    %120 = vmatprep.subr.mxu0 0.0
    %121 = vmatpush1.msra.mxu0 0.0
    %122 = vmatprep.subr.mxu0 0.0
    %123 = vmatpush1.msra.mxu0 0.0
    %124 = vmatprep.subr.mxu0 0.0
    %125 = vmatpush1.msra.mxu0 0.0
    %126 = vmatprep.subr.mxu0 0.0
    %127 = vmatpush1.msra.mxu0 0.0
    %128 = vmatprep.subr.mxu0 0.0
    %129 = vmatpush1.msra.mxu0 0.0
    %130 = vmatprep.subr.mxu0 0.0
    %131 = vmatpush1.msra.mxu0 0.0
    %132 = vmatprep.subr.mxu0 0.0
    %133 = vmatpush1.msra.mxu0 0.0
    %134 = vmatprep.subr.mxu0 0.0
    %135 = vmatpush1.msra.mxu0 0.0
    %136 = vmatprep.subr.mxu0 0.0
    %137 = vmatpush1.msra.mxu0 0.0
    %138 = vmatprep.subr.mxu0 0.0
    %139 = vmatpush1.msra.mxu0 0.0
    %140 = vmatprep.subr.mxu0 0.0
    %141 = vmatpush1.msra.mxu0 0.0
    %142 = vmatprep.subr.mxu0 0.0
    %143 = vmatpush1.msra.mxu0 0.0
    %144 = vmatprep.subr.mxu0 0.0
    %145 = vmatpush1.msra.mxu0 0.0
    %146 = vmatprep.subr.mxu0 0.0
    %147 = vmatpush1.msra.mxu0 0.0
    %148 = vmatprep.subr.mxu0 0.0
    %149 = vmatpush1.msra.mxu0 0.0
    %150 = vmatprep.subr.mxu0 0.0
    %151 = vmatpush1.msra.mxu0 0.0
    %152 = vmatprep.subr.mxu0 0.0
    %153 = vmatpush1.msra.mxu0 0.0
    %154 = vmatprep.subr.mxu0 0.0
    %155 = vmatpush1.msra.mxu0 0.0
    %156 = vmatprep.subr.mxu0 0.0
    %157 = vmatpush1.msra.mxu0 0.0
    %158 = vmatprep.subr.mxu0 0.0
    %159 = vmatpush1.msra.mxu0 0.0
    %160 = vmatprep.mubr.f32.mxu0 0.0
    %161 = vmatmul.mubr.f32.gmra.mrb[0].mxu0 %v94
    %v162 = vpop.f32.mrb[0].mxu0
    %v163 = vadd.f32 %v90, %v162
    %v164 = vpop.f32.mrb[0].mxu0
    %165 = vdwg.mxu0
    %v166 = vmax.f32 %v163, 0.0
    %v167 = vld [vmem:[#allocation7] sm:$0xff]
    %v168 = vld [vmem:[#allocation7 + $0x8] sm:$0xff]
    %v169 = vld [vmem:[#allocation7 + $0x10] sm:$0xff]
    %v170 = vld [vmem:[#allocation7 + $0x18] sm:$0xff]
    %v171 = vld [vmem:[#allocation7 + $0x20] sm:$0xff]
    %v172 = vld [vmem:[#allocation7 + $0x28] sm:$0xff]
    %v173 = vld [vmem:[#allocation7 + $0x30] sm:$0xff]
    %v174 = vld [vmem:[#allocation7 + $0x38] sm:$0xff]
    %v175 = vld [vmem:[#allocation7 + $0x40] sm:$0xff]
    %v176 = vld [vmem:[#allocation7 + $0x48] sm:$0xff]
    %v177 = vld [vmem:[#allocation7 + $0x50] sm:$0xff]
    %v178 = vld [vmem:[#allocation7 + $0x58] sm:$0xff]
    %v179 = vld [vmem:[#allocation7 + $0x60] sm:$0xff]
    %v180 = vld [vmem:[#allocation7 + $0x68] sm:$0xff]
    %v181 = vld [vmem:[#allocation7 + $0x70] sm:$0xff]
    %v182 = vld [vmem:[#allocation7 + $0x78] sm:$0xff]
    %v183 = vld [vmem:[%s4] sm:$0x1]
    %v185 = vlaneseq
    %v186 = vshrl.u32 %v185, 7
    %v187 = vsub.s32 0, %v186
    %v188 = vrot.slane %v183, %v187
    %190 = vmatprep.subr.mxu0 0.0
    %191 = vmatpush1.msra.mxu0 %v167
    %192 = vmatprep.subr.mxu0 0.0
    %193 = vmatpush1.msra.mxu0 %v168
    %194 = vmatprep.subr.mxu0 0.0
    %195 = vmatpush1.msra.mxu0 %v169
    %196 = vmatprep.subr.mxu0 0.0
    %197 = vmatpush1.msra.mxu0 %v170
    %198 = vmatprep.subr.mxu0 0.0
    %199 = vmatpush1.msra.mxu0 %v171
    %200 = vmatprep.subr.mxu0 0.0
    %201 = vmatpush1.msra.mxu0 %v172
    %202 = vmatprep.subr.mxu0 0.0
    %203 = vmatpush1.msra.mxu0 %v173
    %204 = vmatprep.subr.mxu0 0.0
    %205 = vmatpush1.msra.mxu0 %v174
    %206 = vmatprep.subr.mxu0 0.0
    %207 = vmatpush1.msra.mxu0 %v175
    %208 = vmatprep.subr.mxu0 0.0
    %209 = vmatpush1.msra.mxu0 %v176
    %210 = vmatprep.subr.mxu0 0.0
    %211 = vmatpush1.msra.mxu0 %v177
    %212 = vmatprep.subr.mxu0 0.0
    %213 = vmatpush1.msra.mxu0 %v178
    %214 = vmatprep.subr.mxu0 0.0
    %215 = vmatpush1.msra.mxu0 %v179
    %216 = vmatprep.subr.mxu0 0.0
    %217 = vmatpush1.msra.mxu0 %v180
    %218 = vmatprep.subr.mxu0 0.0
    %219 = vmatpush1.msra.mxu0 %v181
    %220 = vmatprep.subr.mxu0 0.0
    %221 = vmatpush1.msra.mxu0 %v182
    %222 = vmatprep.subr.mxu0 0.0
    %223 = vmatpush1.msra.mxu0 0.0
    %224 = vmatprep.subr.mxu0 0.0
    %225 = vmatpush1.msra.mxu0 0.0
    %226 = vmatprep.subr.mxu0 0.0
    %227 = vmatpush1.msra.mxu0 0.0
    %228 = vmatprep.subr.mxu0 0.0
    %229 = vmatpush1.msra.mxu0 0.0
    %230 = vmatprep.subr.mxu0 0.0
    %231 = vmatpush1.msra.mxu0 0.0
    %232 = vmatprep.subr.mxu0 0.0
    %233 = vmatpush1.msra.mxu0 0.0
    %234 = vmatprep.subr.mxu0 0.0
    %235 = vmatpush1.msra.mxu0 0.0
    %236 = vmatprep.subr.mxu0 0.0
    %237 = vmatpush1.msra.mxu0 0.0
    %238 = vmatprep.subr.mxu0 0.0
    %239 = vmatpush1.msra.mxu0 0.0
    %240 = vmatprep.subr.mxu0 0.0
    %241 = vmatpush1.msra.mxu0 0.0
    %242 = vmatprep.subr.mxu0 0.0
    %243 = vmatpush1.msra.mxu0 0.0
    %244 = vmatprep.subr.mxu0 0.0
    %245 = vmatpush1.msra.mxu0 0.0
    %246 = vmatprep.subr.mxu0 0.0
    %247 = vmatpush1.msra.mxu0 0.0
    %248 = vmatprep.subr.mxu0 0.0
    %249 = vmatpush1.msra.mxu0 0.0
    %250 = vmatprep.subr.mxu0 0.0
    %251 = vmatpush1.msra.mxu0 0.0
    %252 = vmatprep.subr.mxu0 0.0
    %253 = vmatpush1.msra.mxu0 0.0
    %254 = vmatprep.mubr.f32.mxu0 0.0
    %255 = vmatmul.mubr.f32.gmra.mrb[0].mxu0 %v166
    %v256 = vpop.f32.mrb[0].mxu0
    %v257 = vadd.f32 %v188, %v256
    %v258 = vpop.f32.mrb[0].mxu0
    %259 = vdwg.mxu0
    %v260 = vmax.f32 %v257, 0.0
    %v261 = vld [vmem:[#allocation8] sm:$0xff]
    %v262 = vld [vmem:[#allocation8 + $0x8] sm:$0xff]
    %v263 = vld [vmem:[#allocation8 + $0x10] sm:$0xff]
    %v264 = vld [vmem:[#allocation8 + $0x18] sm:$0xff]
    %v265 = vld [vmem:[#allocation8 + $0x20] sm:$0xff]
    %v266 = vld [vmem:[#allocation8 + $0x28] sm:$0xff]
    %v267 = vld [vmem:[#allocation8 + $0x30] sm:$0xff]
    %v268 = vld [vmem:[#allocation8 + $0x38] sm:$0xff]
    %v269 = vld [vmem:[#allocation8 + $0x40] sm:$0xff]
    %v270 = vld [vmem:[#allocation8 + $0x48] sm:$0xff]
    %v271 = vld [vmem:[#allocation8 + $0x50] sm:$0xff]
    %v272 = vld [vmem:[#allocation8 + $0x58] sm:$0xff]
    %v273 = vld [vmem:[#allocation8 + $0x60] sm:$0xff]
    %v274 = vld [vmem:[#allocation8 + $0x68] sm:$0xff]
    %v275 = vld [vmem:[#allocation8 + $0x70] sm:$0xff]
    %v276 = vld [vmem:[#allocation8 + $0x78] sm:$0xff]
    %v277 = vld [vmem:[%s6] sm:$0x1]
    %v279 = vlaneseq
    %v280 = vshrl.u32 %v279, 7
    %v281 = vsub.s32 0, %v280
    %v282 = vrot.slane %v277, %v281
    %284 = vmatprep.subr.mxu0 0.0
    %285 = vmatpush1.msra.mxu0 %v261
    %286 = vmatprep.subr.mxu0 0.0
    %287 = vmatpush1.msra.mxu0 %v262
    %288 = vmatprep.subr.mxu0 0.0
    %289 = vmatpush1.msra.mxu0 %v263
    %290 = vmatprep.subr.mxu0 0.0
    %291 = vmatpush1.msra.mxu0 %v264
    %292 = vmatprep.subr.mxu0 0.0
    %293 = vmatpush1.msra.mxu0 %v265
    %294 = vmatprep.subr.mxu0 0.0
    %295 = vmatpush1.msra.mxu0 %v266
    %296 = vmatprep.subr.mxu0 0.0
    %297 = vmatpush1.msra.mxu0 %v267
    %298 = vmatprep.subr.mxu0 0.0
    %299 = vmatpush1.msra.mxu0 %v268
    %300 = vmatprep.subr.mxu0 0.0
    %301 = vmatpush1.msra.mxu0 %v269
    %302 = vmatprep.subr.mxu0 0.0
    %303 = vmatpush1.msra.mxu0 %v270
    %304 = vmatprep.subr.mxu0 0.0
    %305 = vmatpush1.msra.mxu0 %v271
    %306 = vmatprep.subr.mxu0 0.0
    %307 = vmatpush1.msra.mxu0 %v272
    %308 = vmatprep.subr.mxu0 0.0
    %309 = vmatpush1.msra.mxu0 %v273
    %310 = vmatprep.subr.mxu0 0.0
    %311 = vmatpush1.msra.mxu0 %v274
    %312 = vmatprep.subr.mxu0 0.0
    %313 = vmatpush1.msra.mxu0 %v275
    %314 = vmatprep.subr.mxu0 0.0
    %315 = vmatpush1.msra.mxu0 %v276
    %316 = vmatprep.subr.mxu0 0.0
    %317 = vmatpush1.msra.mxu0 0.0
    %318 = vmatprep.subr.mxu0 0.0
    %319 = vmatpush1.msra.mxu0 0.0
    %320 = vmatprep.subr.mxu0 0.0
    %321 = vmatpush1.msra.mxu0 0.0
    %322 = vmatprep.subr.mxu0 0.0
    %323 = vmatpush1.msra.mxu0 0.0
    %324 = vmatprep.subr.mxu0 0.0
    %325 = vmatpush1.msra.mxu0 0.0
    %326 = vmatprep.subr.mxu0 0.0
    %327 = vmatpush1.msra.mxu0 0.0
    %328 = vmatprep.subr.mxu0 0.0
    %329 = vmatpush1.msra.mxu0 0.0
    %330 = vmatprep.subr.mxu0 0.0
    %331 = vmatpush1.msra.mxu0 0.0
    %332 = vmatprep.subr.mxu0 0.0
    %333 = vmatpush1.msra.mxu0 0.0
    %334 = vmatprep.subr.mxu0 0.0
    %335 = vmatpush1.msra.mxu0 0.0
    %336 = vmatprep.subr.mxu0 0.0
    %337 = vmatpush1.msra.mxu0 0.0
    %338 = vmatprep.subr.mxu0 0.0
    %339 = vmatpush1.msra.mxu0 0.0
    %340 = vmatprep.subr.mxu0 0.0
    %341 = vmatpush1.msra.mxu0 0.0
    %342 = vmatprep.subr.mxu0 0.0
    %343 = vmatpush1.msra.mxu0 0.0
    %344 = vmatprep.subr.mxu0 0.0
    %345 = vmatpush1.msra.mxu0 0.0
    %346 = vmatprep.subr.mxu0 0.0
    %347 = vmatpush1.msra.mxu0 0.0
    %348 = vmatprep.mubr.f32.mxu0 0.0
    %349 = vmatmul.mubr.f32.gmra.mrb[0].mxu0 %v260
    %v350 = vpop.f32.mrb[0].mxu0
    %v351 = vadd.f32 %v282, %v350
    %v352 = vpop.f32.mrb[0].mxu0
    %353 = vdwg.mxu0
    %355 = vrot.lane.b32.xlu0 %v351, 120
    %v356 = vpop.permute.xlu0 %355
    %vm358 = vcmask 7168
    %359 = vst.msk [vmem:[%s8] sm:$0xff] %vm358, %v356
    %v360 = vlaneseq
    %v361 = vand.u32 %v360, 127
    %vm362 = vcmp.lt.s32.totalorder %v361, 8
    %v363 = vsel %vm362, %v351, -inf
    %364 = vmax.xlane.f32.xlu0 %v363
    %v365 = vpop.xlane.xlu0 %364
    %v366 = vsub.f32 %v363, %v365
    %v367 = vmul.f32 %v366, 1.442695
    %v368 = vpow.pop %v367
    %369 = vadd.xlane.f32.xlu0 %v368
    %v370 = vpop.xlane.xlu0 %369
    %v371 = vrcp.pop %v370
    %v372 = vmul.f32 %v368, %v371
    %v373 = vpack.c.bf16 %v372, %v372
    %374 = vst [vmem:[#allocation10] sm:$0xf] %v373
    // Predicated region
    $region46: #{tpu_custom_call.1} parent=1 // pred_check
      _
    $region47: #{tpu_custom_call.1} parent=1 // pred_check_branch
      %376 = sbr.rel (0) target = $region49
    $region48: #{tpu_custom_call.1} parent=1 // pred_region
      %s378 = ssub.s32 64, 64
      %379 = vsyncadd [#allocation4], %s378
      %s381 = sshll.u32 [#allocation10], 4
      %s382 = int_to_ptr.vmem [resolvable:$true] %s381
      %384 = dma.vmem_to_hbm [thread:$0]  %s382, 64, %s7, [#allocation4]
    $region49: #{tpu_custom_call.1} parent=1 // pred_fallthru
      _
    // Predicated region
    $region50: #{tpu_custom_call.1} parent=1 // pred_check
      _
    $region51: #{tpu_custom_call.1} parent=1 // pred_check_branch
      %386 = sbr.rel (0) target = $region53
    $region52: #{tpu_custom_call.1} parent=1 // pred_region
      _
    $region53: #{tpu_custom_call.1} parent=1 // pred_fallthru
      _
    // Predicated region
    $region54: #{tpu_custom_call.1} parent=1 // pred_check
      _
    $region55: #{tpu_custom_call.1} parent=1 // pred_check_branch
      %388 = sbr.rel (0) target = $region57
    $region56: #{tpu_custom_call.1} parent=1 // pred_region
      %389 = dma.done [#allocation4], 64
    $region57: #{tpu_custom_call.1} parent=1 // pred_fallthru
      _
    // Predicated region
    $region58: #{tpu_custom_call.1} parent=1 // pred_check
      _
    $region59: #{tpu_custom_call.1} parent=1 // pred_check_branch
      %391 = sbr.rel (0) target = $region61
    $region60: #{tpu_custom_call.1} parent=1 // pred_region
      _
    $region61: #{tpu_custom_call.1} parent=1 // pred_fallthru
      _
    %392 = vsyncpa [#allocation3], 1
    %393 = vsyncpa [#allocation6], 1
    %394 = vsyncpa [#allocation9], 1
    %395 = vsyncpa [#allocation4], 1

</llo_original>
